<compile_context>
chip_gen: v6e
topology: v6e:2x2x1
jax: 0.10.0
libtpu: 0.0.40
codegen_flags: <defaults>
</compile_context>

<pallas_src>
import jax
import jax.numpy as jnp
from jax import lax
from jax.experimental import pallas as pl
from jax.experimental.pallas import tpu as pltpu


def rbm_logp_kernel(v_ref, w_ref, b_h_ref, b_v_ref, out_ref, logits_acc, row_acc):
    # v_ref  : (TB, TD) bf16  visible units tile (compute dtype)
    # w_ref  : (TH, TD) bf16  weight tile (stored (H, D), no transpose)
    # b_h_ref: (1, TH)  f32   hidden bias tile (padded entries = -1e30)
    # b_v_ref: (1, TD)  f32   visible bias tile
    # out_ref: (TB, 1)  f32   per-row unnormalized log-prob
    # logits_acc: (2, TB, TH) f32 scratch -- ping-ponged over hidden tiles, accumulates
    #                                        b_h + v @ W.T over D tiles
    # row_acc   : (TB, 1)     f32 scratch -- accumulates softplus-sums over H tiles + v.b_v
    j = pl.program_id(1)          # hidden tile index
    k = pl.program_id(2)          # visible (reduction) tile index
    nh = pl.num_programs(1)
    nd = pl.num_programs(2)

    TB, TH = logits_acc.shape[1], logits_acc.shape[2]
    slot = lax.rem(j, 2)
    acc = logits_acc.at[slot]     # (TB, TH) view of the current ping-pong buffer

    @pl.when((j == 0) & (k == 0))
    def _init_row():
        row_acc[...] = jnp.zeros_like(row_acc)

    @pl.when(k == 0)
    def _init_logits():
        # Seed with the hidden bias (broadcast over the batch tile): removes the
        # (TB, TH) bias add from the softplus tail at no extra store cost.
        acc[...] = jnp.broadcast_to(b_h_ref[...], (TB, TH))

    v = v_ref[...]                                            # bf16 (TB, TD)

    # MXU: (TB, TD) . (TH, TD)^T -> (TB, TH); bf16 operands, f32 accumulation.
    # ((1,),(1,)) contraction is the native A.B^T MXU form -- no W transpose in VMEM.
    acc[...] += lax.dot_general(
        v, w_ref[...],
        dimension_numbers=(((1,), (1,)), ((), ())),
        preferred_element_type=jnp.float32)

    # Visible-bias term (v * b_v).sum(-1): accumulate over D tiles, once per batch
    # tile (gated on the first hidden tile). bf16*f32 promotes to f32.
    @pl.when(j == 0)
    def _visible_bias():
        row_acc[...] += jnp.sum(v * b_v_ref[...], axis=-1, keepdims=True)

    # After the last D tile: stable softplus (bias already folded in), reduce over H.
    # Padded hidden columns carry b_h = -1e30 -> logaddexp(-1e30, 0) == 0 exactly.
    @pl.when(k == nd - 1)
    def _softplus_reduce():
        row_acc[...] += jnp.sum(jnp.logaddexp(acc[...], 0.0), axis=-1, keepdims=True)

    @pl.when((j == nh - 1) & (k == nd - 1))
    def _store():
        out_ref[...] = row_acc[...]


def _round_up(x, m):
    return ((x + m - 1) // m) * m


def prepare_rbm_params(W, b_h, b_v, *, th=2048, td=1024, compute_dtype=jnp.bfloat16):
    """Pad + cast the RBM parameters once, outside the forward hot path.

    W: (H, D); b_h: (H,); b_v: (D,). compute_dtype is the MXU operand dtype; for
    non-binary visible units consider float32 (slower, exact) -- bf16 is exact only
    for {0,1} inputs.
    """
    H, D = W.shape
    TH = min(th, _round_up(H, 128))
    TD = min(td, _round_up(D, 128))
    H_pad, D_pad = _round_up(H, TH), _round_up(D, TD)

    w_p = jnp.pad(W.astype(jnp.float32),
                  ((0, H_pad - H), (0, D_pad - D))).astype(compute_dtype)
    # Padded hidden units get b_h = -1e30 (kept in f32) so softplus(0 + pad) == 0.
    b_h_p = jnp.pad(b_h.astype(jnp.float32), (0, H_pad - H),
                    constant_values=-1e30).reshape(1, H_pad)
    b_v_p = jnp.pad(b_v.astype(jnp.float32), (0, D_pad - D)).reshape(1, D_pad)
    return dict(w=w_p, b_h=b_h_p, b_v=b_v_p, H=H, D=D, H_pad=H_pad, D_pad=D_pad,
                TH=TH, TD=TD, compute_dtype=compute_dtype)


def rbm_forward(v, params, *, tb=512):
    """RBM.forward / logp_v_unnorm.  v: (B, D) -> (B,) float32."""
    B, D = v.shape
    assert D == params["D"], (v.shape, params["D"])
    TH, TD = params["TH"], params["TD"]
    H_pad, D_pad = params["H_pad"], params["D_pad"]
    compute_dtype = params["compute_dtype"]
    cbytes = jnp.dtype(compute_dtype).itemsize

    # Batch tile: multiple of 128; prefer >= 2 batch tiles when B allows so the
    # "parallel" batch axis keeps both v7x TensorCores busy.
    B_128 = _round_up(B, 128)
    TB = min(tb, B_128)
    if B_128 // TB == 1 and B_128 >= 256:
        TB = min(TB, max(128, (B_128 // 2) // 128 * 128))
    B_pad = _round_up(B, TB)
    nb, nh, nd = B_pad // TB, H_pad // TH, D_pad // TD

    # v: cast to compute dtype (bf16 default) and zero-pad -- only per-call prep left.
    v_p = jnp.pad(v.astype(compute_dtype), ((0, B_pad - B), (0, D_pad - D)))

    # Live-VMEM estimate: ping-pong f32 acc + double-buffered W/v tiles + biases.
    vmem_est = (2 * TB * TH * 4 + 2 * TH * TD * cbytes + 2 * TB * TD * cbytes
                + 2 * (TH + TD) * 4 + 4 * TB + 4096)
    vmem_limit = max(32 * 1024 * 1024, min(int(vmem_est * 1.25), 96 * 1024 * 1024))

    cost = pl.CostEstimate(
        flops=2 * B_pad * H_pad * D_pad + 4 * B_pad * H_pad,
        transcendentals=2 * B_pad * H_pad,
        bytes_accessed=(nb * H_pad * D_pad * cbytes       # W re-read per batch tile
                        + nh * B_pad * D_pad * cbytes     # v re-read per hidden tile
                        + B_pad * 4))

    out = pl.pallas_call(
        rbm_logp_kernel,
        out_shape=jax.ShapeDtypeStruct((B_pad, 1), jnp.float32),
        grid_spec=pltpu.PrefetchScalarGridSpec(
            num_scalar_prefetch=0,
            grid=(nb, nh, nd),
            in_specs=[
                pl.BlockSpec((TB, TD), lambda i, j, k: (i, k)),   # v (bf16)
                pl.BlockSpec((TH, TD), lambda i, j, k: (j, k)),   # W (bf16, no transpose)
                pl.BlockSpec((1, TH), lambda i, j, k: (0, j)),    # b_h (f32)
                pl.BlockSpec((1, TD), lambda i, j, k: (0, k)),    # b_v (f32)
            ],
            out_specs=pl.BlockSpec((TB, 1), lambda i, j, k: (i, 0)),
            scratch_shapes=[
                pltpu.VMEM((2, TB, TH), jnp.float32),  # ping-pong logits accumulator
                pltpu.VMEM((TB, 1), jnp.float32),      # per-row sum over H tiles + v.b_v
            ],
        ),
        compiler_params=pltpu.CompilerParams(
            dimension_semantics=("parallel", "arbitrary", "arbitrary"),
            vmem_limit_bytes=vmem_limit,
        ),
        cost_estimate=cost,
    )(v_p, params["w"], params["b_h"], params["b_v"])
    return out[:B, 0]


def rbm_forward_raw(v, W, b_h, b_v, **kw):
    """Convenience wrapper: per-call param prep (prefer prepare_rbm_params + rbm_forward)."""
    tb = kw.pop("tb", 512)
    return rbm_forward(v, prepare_rbm_params(W, b_h, b_v, **kw), tb=tb)


def rbm_forward_ref(v, W, b_h, b_v):
    logits = v @ W.T + b_h[None]
    sp = jnp.sum(jax.nn.softplus(logits), axis=-1)
    vt = jnp.sum(v * b_v[None], axis=-1)
    return sp + vt


if __name__ == "__main__":
    key = jax.random.PRNGKey(0)
    k_w, k_v, k_bh, k_bv, k_w2, k_v2, k_bh2, k_bv2 = jax.random.split(key, 8)

    # --- Small shapes consistent with RBM(n_visible, n_hidden) -------------------
    B, n_visible, n_hidden = 8, 16, 32
    bound = 1.0 / (n_visible ** 0.5)
    # nn.Linear(n_visible, n_hidden).weight is (n_hidden, n_visible), U(-bound, bound).
    W = jax.random.uniform(k_w, (n_hidden, n_visible), jnp.float32,
                           minval=-bound, maxval=bound)
    # Module inits biases to zero; use small random values to exercise both terms.
    b_h = 0.1 * jax.random.normal(k_bh, (n_hidden,), jnp.float32)
    b_v = 0.1 * jax.random.normal(k_bv, (n_visible,), jnp.float32)
    x = jax.random.bernoulli(k_v, 0.5, (B, n_visible)).astype(jnp.float32)

    prep = prepare_rbm_params(W, b_h, b_v)          # param prep hoisted out of hot path
    out = jax.block_until_ready(rbm_forward(x, prep))
    # Reference uses bf16-rounded W to match the kernel's explicit MXU compute dtype
    # (v is {0,1}, so bf16 v / bf16 products are exact; accumulation stays f32 in both).
    ref = rbm_forward_ref(x, W.astype(jnp.bfloat16).astype(jnp.float32), b_h, b_v)
    assert out.shape == (B,)
    assert jnp.allclose(out, ref, atol=1e-4, rtol=1e-4), (out, ref)

    # --- Multi-tile shapes (grid 3x3x3) to exercise accumulators, ping-pong, padding
    B2, D2, H2 = 300, 700, 650
    bound2 = 1.0 / (D2 ** 0.5)
    W2 = jax.random.uniform(k_w2, (H2, D2), jnp.float32, minval=-bound2, maxval=bound2)
    b_h2 = 0.1 * jax.random.normal(k_bh2, (H2,), jnp.float32)
    b_v2 = 0.1 * jax.random.normal(k_bv2, (D2,), jnp.float32)
    x2 = jax.random.bernoulli(k_v2, 0.5, (B2, D2)).astype(jnp.float32)

    prep2 = prepare_rbm_params(W2, b_h2, b_v2, th=256, td=256)
    out2 = jax.block_until_ready(rbm_forward(x2, prep2, tb=128))
    ref2 = rbm_forward_ref(x2, W2.astype(jnp.bfloat16).astype(jnp.float32), b_h2, b_v2)
    assert out2.shape == (B2,)
    assert jnp.allclose(out2, ref2, atol=1e-3, rtol=5e-4), (out2, ref2)

    print("KERNEL_OK")
</pallas_src>

<mosaic_0001>
module attributes {stable_mosaic.version = 11 : i64} {
  func.func @rbm_logp_kernel(%arg0: i32, %arg1: i32, %arg2: i32, %arg3: memref<128x128xbf16, #tpu.memory_space<vmem>>, %arg4: memref<128x128xbf16, #tpu.memory_space<vmem>>, %arg5: memref<1x128xf32, #tpu.memory_space<vmem>>, %arg6: memref<1x128xf32, #tpu.memory_space<vmem>>, %arg7: memref<128x1xf32, #tpu.memory_space<vmem>>, %arg8: memref<2x128x128xf32, #tpu.memory_space<vmem>>, %arg9: memref<128x1xf32, #tpu.memory_space<vmem>>) attributes {dimension_semantics = [#tpu.dimension_semantics<parallel>, #tpu.dimension_semantics<arbitrary>, #tpu.dimension_semantics<arbitrary>], iteration_bounds = array<i64: 1, 1, 1>, scalar_prefetch = 0 : i64, scratch_operands = 2 : i64, tpu.core_type = #tpu.core_type<tc>, window_params = [{transform_indices = @transform_0, window_bounds = array<i64: 128, 128>}, {transform_indices = @transform_1, window_bounds = array<i64: 128, 128>}, {transform_indices = @transform_2, window_bounds = array<i64: 1, 128>}, {transform_indices = @transform_3, window_bounds = array<i64: 1, 128>}, {transform_indices = @transform_4, window_bounds = array<i64: 128, 1>}]} {
    %c2_i32 = arith.constant 2 : i32
    %0 = arith.remsi %arg1, %c2_i32 : i32
    %c0_i32 = arith.constant 0 : i32
    %1 = arith.cmpi eq, %arg1, %c0_i32 : i32
    %c0_i32_0 = arith.constant 0 : i32
    %2 = arith.cmpi eq, %arg2, %c0_i32_0 : i32
    %3 = arith.andi %1, %2 : i1
    %4 = arith.extui %3 : i1 to i32
    %c0_i32_1 = arith.constant 0 : i32
    %5 = arith.cmpi ne, %4, %c0_i32_1 : i32
    scf.if %5 {
      %cst_18 = arith.constant 0.000000e+00 : f32
      %31 = vector.broadcast %cst_18 : f32 to vector<128x1xf32>
      %c0_19 = arith.constant 0 : index
      %c0_20 = arith.constant 0 : index
      %32 = vector.load %arg9[%c0_19, %c0_20] : memref<128x1xf32, #tpu.memory_space<vmem>>, vector<128x1xf32>
      tpu.vector_store %arg9[%c0_19, %c0_20], %31 {strides = array<i32>} : memref<128x1xf32, #tpu.memory_space<vmem>>, vector<128x1xf32>,
    } else {
    }
    %c0_i32_2 = arith.constant 0 : i32
    %6 = arith.cmpi eq, %arg2, %c0_i32_2 : i32
    %7 = arith.extui %6 : i1 to i32
    %c0_i32_3 = arith.constant 0 : i32
    %8 = arith.cmpi ne, %7, %c0_i32_3 : i32
    scf.if %8 {
      %c0_18 = arith.constant 0 : index
      %c0_19 = arith.constant 0 : index
      %31 = vector.load %arg5[%c0_18, %c0_19] : memref<1x128xf32, #tpu.memory_space<vmem>>, vector<1x128xf32>
      %32 = vector.shape_cast %31 : vector<1x128xf32> to vector<1x128xf32>
      %33 = vector.broadcast %32 : vector<1x128xf32> to vector<128x128xf32>
      %34 = arith.index_cast %0 : i32 to index
      %c0_20 = arith.constant 0 : index
      %c0_21 = arith.constant 0 : index
      %35 = vector.load %arg8[%34, %c0_20, %c0_21] : memref<2x128x128xf32, #tpu.memory_space<vmem>>, vector<1x128x128xf32>
      %36 = vector.shape_cast %35 : vector<1x128x128xf32> to vector<128x128xf32>
      %37 = vector.shape_cast %33 : vector<128x128xf32> to vector<1x128x128xf32>
      tpu.vector_store %arg8[%34, %c0_20, %c0_21], %37 {strides = array<i32>} : memref<2x128x128xf32, #tpu.memory_space<vmem>>, vector<1x128x128xf32>,
    } else {
    }
    %c0 = arith.constant 0 : index
    %c0_4 = arith.constant 0 : index
    %9 = vector.load %arg3[%c0, %c0_4] : memref<128x128xbf16, #tpu.memory_space<vmem>>, vector<128x128xbf16>
    %10 = arith.index_cast %0 : i32 to index
    %c0_5 = arith.constant 0 : index
    %c0_6 = arith.constant 0 : index
    %11 = vector.load %arg8[%10, %c0_5, %c0_6] : memref<2x128x128xf32, #tpu.memory_space<vmem>>, vector<1x128x128xf32>
    %12 = vector.shape_cast %11 : vector<1x128x128xf32> to vector<128x128xf32>
    %c0_7 = arith.constant 0 : index
    %c0_8 = arith.constant 0 : index
    %13 = vector.load %arg4[%c0_7, %c0_8] : memref<128x128xbf16, #tpu.memory_space<vmem>>, vector<128x128xbf16>
    %cst = arith.constant dense<0.000000e+00> : vector<128x128xf32>
    %14 = tpu.matmul %9, %13, %cst {dimension_numbers = #tpu.dot_dimension_numbers<[1], [1], [0], [0], [0, 0, 1, 0], [], []>} : vector<128x128xbf16>, vector<128x128xbf16>, vector<128x128xf32> -> vector<128x128xf32>
    %15 = arith.addf %12, %14 : vector<128x128xf32>
    %16 = arith.index_cast %0 : i32 to index
    %c0_9 = arith.constant 0 : index
    %c0_10 = arith.constant 0 : index
    %17 = vector.load %arg8[%16, %c0_9, %c0_10] : memref<2x128x128xf32, #tpu.memory_space<vmem>>, vector<1x128x128xf32>
    %18 = vector.shape_cast %17 : vector<1x128x128xf32> to vector<128x128xf32>
    %19 = vector.shape_cast %15 : vector<128x128xf32> to vector<1x128x128xf32>
    tpu.vector_store %arg8[%16, %c0_9, %c0_10], %19 {strides = array<i32>} : memref<2x128x128xf32, #tpu.memory_space<vmem>>, vector<1x128x128xf32>,
    %c0_i32_11 = arith.constant 0 : i32
    %20 = arith.cmpi eq, %arg1, %c0_i32_11 : i32
    %21 = arith.extui %20 : i1 to i32
    %c0_i32_12 = arith.constant 0 : i32
    %22 = arith.cmpi ne, %21, %c0_i32_12 : i32
    scf.if %22 {
      %c0_18 = arith.constant 0 : index
      %c0_19 = arith.constant 0 : index
      %31 = vector.load %arg9[%c0_18, %c0_19] : memref<128x1xf32, #tpu.memory_space<vmem>>, vector<128x1xf32>
      %c0_20 = arith.constant 0 : index
      %c0_21 = arith.constant 0 : index
      %32 = vector.load %arg6[%c0_20, %c0_21] : memref<1x128xf32, #tpu.memory_space<vmem>>, vector<1x128xf32>
      %33 = arith.extf %9 : vector<128x128xbf16> to vector<128x128xf32>
      %34 = vector.broadcast %32 : vector<1x128xf32> to vector<128x128xf32>
      %35 = arith.mulf %33, %34 : vector<128x128xf32>
      %cst_22 = arith.constant dense<0.000000e+00> : vector<128xf32>
      %36 = vector.multi_reduction <add>, %35, %cst_22 [1] : vector<128x128xf32> to vector<128xf32>
      %37 = vector.shape_cast %36 : vector<128xf32> to vector<128x1xf32>
      %38 = arith.addf %31, %37 : vector<128x1xf32>
      %c0_23 = arith.constant 0 : index
      %c0_24 = arith.constant 0 : index
      %39 = vector.load %arg9[%c0_23, %c0_24] : memref<128x1xf32, #tpu.memory_space<vmem>>, vector<128x1xf32>
      tpu.vector_store %arg9[%c0_23, %c0_24], %38 {strides = array<i32>} : memref<128x1xf32, #tpu.memory_space<vmem>>, vector<128x1xf32>,
    } else {
    }
    %c0_i32_13 = arith.constant 0 : i32
    %23 = arith.cmpi eq, %arg2, %c0_i32_13 : i32
    %24 = arith.extui %23 : i1 to i32
    %c0_i32_14 = arith.constant 0 : i32
    %25 = arith.cmpi ne, %24, %c0_i32_14 : i32
    scf.if %25 {
      %c0_18 = arith.constant 0 : index
      %c0_19 = arith.constant 0 : index
      %31 = vector.load %arg9[%c0_18, %c0_19] : memref<128x1xf32, #tpu.memory_space<vmem>>, vector<128x1xf32>
      %32 = arith.index_cast %0 : i32 to index
      %c0_20 = arith.constant 0 : index
      %c0_21 = arith.constant 0 : index
      %33 = vector.load %arg8[%32, %c0_20, %c0_21] : memref<2x128x128xf32, #tpu.memory_space<vmem>>, vector<1x128x128xf32>
      %34 = vector.shape_cast %33 : vector<1x128x128xf32> to vector<128x128xf32>
      %cst_22 = arith.constant 0.000000e+00 : f32
      %35 = vector.broadcast %cst_22 : f32 to vector<128x128xf32>
      %36 = arith.maximumf %34, %35 : vector<128x128xf32>
      %37 = vector.broadcast %cst_22 : f32 to vector<128x128xf32>
      %38 = arith.subf %34, %37 : vector<128x128xf32>
      %39 = arith.cmpf one, %38, %38 : vector<128x128xf32>
      %40 = vector.broadcast %cst_22 : f32 to vector<128x128xf32>
      %41 = arith.addf %34, %40 : vector<128x128xf32>
      %42 = math.absf %38 : vector<128x128xf32>
      %cst_23 = arith.constant 0.000000e+00 : f32
      %43 = vector.broadcast %cst_23 : f32 to vector<128x128xf32>
      %44 = arith.subf %43, %42 : vector<128x128xf32>
      %45 = math.exp %44 : vector<128x128xf32>
      %46 = math.log1p %45 : vector<128x128xf32>
      %47 = arith.addf %36, %46 : vector<128x128xf32>
      %48 = arith.select %39, %41, %47 : vector<128x128xi1>, vector<128x128xf32>
      %cst_24 = arith.constant dense<0.000000e+00> : vector<128xf32>
      %49 = vector.multi_reduction <add>, %48, %cst_24 [1] : vector<128x128xf32> to vector<128xf32>
      %50 = vector.shape_cast %49 : vector<128xf32> to vector<128x1xf32>
      %51 = arith.addf %31, %50 : vector<128x1xf32>
      %c0_25 = arith.constant 0 : index
      %c0_26 = arith.constant 0 : index
      %52 = vector.load %arg9[%c0_25, %c0_26] : memref<128x1xf32, #tpu.memory_space<vmem>>, vector<128x1xf32>
      tpu.vector_store %arg9[%c0_25, %c0_26], %51 {strides = array<i32>} : memref<128x1xf32, #tpu.memory_space<vmem>>, vector<128x1xf32>,
    } else {
    }
    %c0_i32_15 = arith.constant 0 : i32
    %26 = arith.cmpi eq, %arg1, %c0_i32_15 : i32
    %c0_i32_16 = arith.constant 0 : i32
    %27 = arith.cmpi eq, %arg2, %c0_i32_16 : i32
    %28 = arith.andi %26, %27 : i1
    %29 = arith.extui %28 : i1 to i32
    %c0_i32_17 = arith.constant 0 : i32
    %30 = arith.cmpi ne, %29, %c0_i32_17 : i32
    scf.if %30 {
      %c0_18 = arith.constant 0 : index
      %c0_19 = arith.constant 0 : index
      %31 = vector.load %arg9[%c0_18, %c0_19] : memref<128x1xf32, #tpu.memory_space<vmem>>, vector<128x1xf32>
      %c0_20 = arith.constant 0 : index
      %c0_21 = arith.constant 0 : index
      %32 = vector.load %arg7[%c0_20, %c0_21] : memref<128x1xf32, #tpu.memory_space<vmem>>, vector<128x1xf32>
      tpu.vector_store %arg7[%c0_20, %c0_21], %31 {strides = array<i32>} : memref<128x1xf32, #tpu.memory_space<vmem>>, vector<128x1xf32>,
    } else {
    }
    return
  }
  func.func @transform_0(%arg0: i32, %arg1: i32, %arg2: i32) -> (i32, i32) {
    %c0_i32 = arith.constant 0 : i32
    return %arg0, %arg2 : i32, i32
  }
  func.func @transform_1(%arg0: i32, %arg1: i32, %arg2: i32) -> (i32, i32) {
    %c0_i32 = arith.constant 0 : i32
    return %arg1, %arg2 : i32, i32
  }
  func.func @transform_2(%arg0: i32, %arg1: i32, %arg2: i32) -> (i32, i32) {
    %c0_i32 = arith.constant 0 : i32
    %c0_i32_0 = arith.constant 0 : i32
    return %c0_i32, %arg1 : i32, i32
  }
  func.func @transform_3(%arg0: i32, %arg1: i32, %arg2: i32) -> (i32, i32) {
    %c0_i32 = arith.constant 0 : i32
    %c0_i32_0 = arith.constant 0 : i32
    return %c0_i32, %arg2 : i32, i32
  }
  func.func @transform_4(%arg0: i32, %arg1: i32, %arg2: i32) -> (i32, i32) {
    %c0_i32 = arith.constant 0 : i32
    %c0_i32_0 = arith.constant 0 : i32
    return %arg0, %c0_i32 : i32, i32
  }
}

</mosaic_0001>

<llo_original>
// kernel: tpu_custom_call.1
$region0: #{tpu_custom_call.1}
  #allocation0 [shape = 'u32[]', space=smem, size = 0x4, offset = 0x4, fixed_abs, tag = 'smem constant byte address 0x4 - core index']
  #allocation1 [shape = 'u32[144,128]{1,0:T(1,128)}', space=vmem, size = 0x12000, scoped, tag = 'internal scratch']
  #allocation2 [shape = 'f32[2,128,128]{2,1,0:T(8,128)}', space=vmem, size = 0x20000, scoped, tag = 'scratch operand']
  #allocation3 [shape = 'f32[128,1]{1,0:T(8,128)}', space=vmem, size = 0x10000, scoped, tag = 'scratch operand']
  %s0 = inlined_call_operand.hbm [shape: bf16[128,128], index: 0, kind: input, shape index: {}]
  %s1 = inlined_call_operand.hbm [shape: bf16[128,128], index: 1, kind: input, shape index: {}]
  %s2 = inlined_call_operand.vmem [shape: f32[1,128], index: 2, kind: input, shape index: {}]
  %s3 = inlined_call_operand.vmem [shape: f32[1,128], index: 3, kind: input, shape index: {}]
  %s4 = inlined_call_operand.vmem [shape: f32[128,1], index: 4, kind: output, shape index: {}]
  %s5 = sld [smem:[#allocation0]]
  $region54: #{tpu_custom_call.1} parent=0
    _
  %s7 = ssub.s32 1, %s5
  %s8 = scalar_select 0, %s7, %s5
  $region1: #{tpu_custom_call.1} parent=0
    #allocation4 [shape = 'u8[32768]{0}', space=vmem, size = 0x8000, scoped, tag = 'input window, operand 0, single buffered']
    #allocation5 [shape = 's32[1]{0}', space=sflag, size = 0x4, scoped, tag = 'scoped memory for tpu_custom_call.1']
    #allocation6 [shape = 'u8[32768]{0}', space=vmem, size = 0x8000, scoped, tag = 'input window, operand 1, single buffered']
    #allocation7 [shape = 's32[1]{0}', space=sflag, size = 0x4, scoped, tag = 'scoped memory for tpu_custom_call.1']
    %9 = vsyncpa [#allocation5], 0
    %10 = vsyncpa [#allocation7], 0
    // Predicated region
    $region2: #{tpu_custom_call.1} parent=1 // pred_check
      _
    $region3: #{tpu_custom_call.1} parent=1 // pred_check_branch
      %12 = sbr.rel (0) target = $region5
    $region4: #{tpu_custom_call.1} parent=1 // pred_region
      %s14 = ssub.s32 1024, 1024
      %15 = vsyncadd [#allocation5], %s14
      %s16 = sshll.u32 [#allocation4], 4
      %s17 = int_to_ptr.vmem [resolvable:$true] %s16
      %22 = dma.hbm_to_vmem [thread:$0]  %s0, 1024, %s17, [#allocation5], 64, 64, 4
    $region5: #{tpu_custom_call.1} parent=1 // pred_fallthru
      _
    // Predicated region
    $region6: #{tpu_custom_call.1} parent=1 // pred_check
      _
    $region7: #{tpu_custom_call.1} parent=1 // pred_check_branch
      %24 = sbr.rel (0) target = $region9
    $region8: #{tpu_custom_call.1} parent=1 // pred_region
      %s26 = ssub.s32 1024, 1024
      %27 = vsyncadd [#allocation7], %s26
      %s28 = sshll.u32 [#allocation6], 4
      %s29 = int_to_ptr.vmem [resolvable:$true] %s28
      %34 = dma.hbm_to_vmem [thread:$0]  %s1, 1024, %s29, [#allocation7], 64, 64, 4
    $region9: #{tpu_custom_call.1} parent=1 // pred_fallthru
      _
    // Predicated region
    $region10: #{tpu_custom_call.1} parent=1 // pred_check
      _
    $region11: #{tpu_custom_call.1} parent=1 // pred_check_branch
      %36 = sbr.rel (0) target = $region13
    $region12: #{tpu_custom_call.1} parent=1 // pred_region
      _
    $region13: #{tpu_custom_call.1} parent=1 // pred_fallthru
      _
    // Predicated region
    $region14: #{tpu_custom_call.1} parent=1 // pred_check
      _
    $region15: #{tpu_custom_call.1} parent=1 // pred_check_branch
      %38 = sbr.rel (0) target = $region17
    $region16: #{tpu_custom_call.1} parent=1 // pred_region
      _
    $region17: #{tpu_custom_call.1} parent=1 // pred_fallthru
      _
    // Predicated region
    $region18: #{tpu_custom_call.1} parent=1 // pred_check
      _
    $region19: #{tpu_custom_call.1} parent=1 // pred_check_branch
      %40 = sbr.rel (0) target = $region21
    $region20: #{tpu_custom_call.1} parent=1 // pred_region
      %41 = dma.done [#allocation5], 1024
    $region21: #{tpu_custom_call.1} parent=1 // pred_fallthru
      _
    // Predicated region
    $region22: #{tpu_custom_call.1} parent=1 // pred_check
      _
    $region23: #{tpu_custom_call.1} parent=1 // pred_check_branch
      %43 = sbr.rel (0) target = $region25
    $region24: #{tpu_custom_call.1} parent=1 // pred_region
      %44 = dma.done [#allocation7], 1024
    $region25: #{tpu_custom_call.1} parent=1 // pred_fallthru
      _
    %s46 = ssub.s32 0, 0
    %s47 = ssub.s32 0, 0
    %p48 = scmp.eq.s32.totalorder 0, 0
    %p49 = scmp.eq.s32.totalorder 0, 0
    %p50 = pnand %p48, %p49
    %p51 = pneg %p50
    // Predicated region
    $region26: #{tpu_custom_call.1} parent=1 // pred_check
      _
    $region27: #{tpu_custom_call.1} parent=1 // pred_check_branch
      %53 = sbr.rel (%p50) target = $region29
    $region28: #{tpu_custom_call.1} parent=1 // pred_region
      %vm54 = vcmask 7168
      %55 = vst.msk [vmem:[#allocation3] sm:$0xff] %vm54, 0.0
      %56 = vst.msk [vmem:[#allocation3 + $0x8] sm:$0xff] %vm54, 0.0
      %57 = vst.msk [vmem:[#allocation3 + $0x10] sm:$0xff] %vm54, 0.0
      %58 = vst.msk [vmem:[#allocation3 + $0x18] sm:$0xff] %vm54, 0.0
      %59 = vst.msk [vmem:[#allocation3 + $0x20] sm:$0xff] %vm54, 0.0
      %60 = vst.msk [vmem:[#allocation3 + $0x28] sm:$0xff] %vm54, 0.0
      %61 = vst.msk [vmem:[#allocation3 + $0x30] sm:$0xff] %vm54, 0.0
      %62 = vst.msk [vmem:[#allocation3 + $0x38] sm:$0xff] %vm54, 0.0
      %63 = vst.msk [vmem:[#allocation3 + $0x40] sm:$0xff] %vm54, 0.0
      %64 = vst.msk [vmem:[#allocation3 + $0x48] sm:$0xff] %vm54, 0.0
      %65 = vst.msk [vmem:[#allocation3 + $0x50] sm:$0xff] %vm54, 0.0
      %66 = vst.msk [vmem:[#allocation3 + $0x58] sm:$0xff] %vm54, 0.0
      %67 = vst.msk [vmem:[#allocation3 + $0x60] sm:$0xff] %vm54, 0.0
      %68 = vst.msk [vmem:[#allocation3 + $0x68] sm:$0xff] %vm54, 0.0
      %69 = vst.msk [vmem:[#allocation3 + $0x70] sm:$0xff] %vm54, 0.0
      %70 = vst.msk [vmem:[#allocation3 + $0x78] sm:$0xff] %vm54, 0.0
    $region29: #{tpu_custom_call.1} parent=1 // pred_fallthru
      _
    // Predicated region
    $region30: #{tpu_custom_call.1} parent=1 // pred_check
      %p71 = pneg %p49
    $region31: #{tpu_custom_call.1} parent=1 // pred_check_branch
      %73 = sbr.rel (%p71) target = $region33
    $region32: #{tpu_custom_call.1} parent=1 // pred_region
      %v74 = vld [vmem:[%s2] sm:$0x1]
      %v76 = vlaneseq
      %v77 = vshrl.u32 %v76, 7
      %v78 = vsub.s32 0, %v77
      %v79 = vrot.slane %v74, %v78
      %s81 = smul.u32 0, 128
      %s82 = scalar_lea.vmem [#allocation2], %s81
      %83 = vst [vmem:[%s82] sm:$0xff] %v79
      %84 = vst [vmem:[%s82 + $0x8] sm:$0xff] %v79
      %85 = vst [vmem:[%s82 + $0x10] sm:$0xff] %v79
      %86 = vst [vmem:[%s82 + $0x18] sm:$0xff] %v79
      %87 = vst [vmem:[%s82 + $0x20] sm:$0xff] %v79
      %88 = vst [vmem:[%s82 + $0x28] sm:$0xff] %v79
      %89 = vst [vmem:[%s82 + $0x30] sm:$0xff] %v79
      %90 = vst [vmem:[%s82 + $0x38] sm:$0xff] %v79
      %91 = vst [vmem:[%s82 + $0x40] sm:$0xff] %v79
      %92 = vst [vmem:[%s82 + $0x48] sm:$0xff] %v79
      %93 = vst [vmem:[%s82 + $0x50] sm:$0xff] %v79
      %94 = vst [vmem:[%s82 + $0x58] sm:$0xff] %v79
      %95 = vst [vmem:[%s82 + $0x60] sm:$0xff] %v79
      %96 = vst [vmem:[%s82 + $0x68] sm:$0xff] %v79
      %97 = vst [vmem:[%s82 + $0x70] sm:$0xff] %v79
      %98 = vst [vmem:[%s82 + $0x78] sm:$0xff] %v79
    $region33: #{tpu_custom_call.1} parent=1 // pred_fallthru
      _
    %v99 = vld [vmem:[#allocation4] sm:$0xf]
    %v100 = vld [vmem:[#allocation4 + $0x4] sm:$0xf]
    %v101 = vld [vmem:[#allocation4 + $0x8] sm:$0xf]
    %v102 = vld [vmem:[#allocation4 + $0xc] sm:$0xf]
    %v103 = vld [vmem:[#allocation4 + $0x10] sm:$0xf]
    %v104 = vld [vmem:[#allocation4 + $0x14] sm:$0xf]
    %v105 = vld [vmem:[#allocation4 + $0x18] sm:$0xf]
    %v106 = vld [vmem:[#allocation4 + $0x1c] sm:$0xf]
    %v107 = vld [vmem:[#allocation4 + $0x20] sm:$0xf]
    %v108 = vld [vmem:[#allocation4 + $0x24] sm:$0xf]
    %v109 = vld [vmem:[#allocation4 + $0x28] sm:$0xf]
    %v110 = vld [vmem:[#allocation4 + $0x2c] sm:$0xf]
    %v111 = vld [vmem:[#allocation4 + $0x30] sm:$0xf]
    %v112 = vld [vmem:[#allocation4 + $0x34] sm:$0xf]
    %v113 = vld [vmem:[#allocation4 + $0x38] sm:$0xf]
    %v114 = vld [vmem:[#allocation4 + $0x3c] sm:$0xf]
    %s115 = smul.u32 0, 128
    %s116 = scalar_lea.vmem [#allocation2], %s115
    %v117 = vld [vmem:[%s116] sm:$0xff]
    %v118 = vld [vmem:[%s116 + $0x8] sm:$0xff]
    %v119 = vld [vmem:[%s116 + $0x10] sm:$0xff]
    %v120 = vld [vmem:[%s116 + $0x18] sm:$0xff]
    %v121 = vld [vmem:[%s116 + $0x20] sm:$0xff]
    %v122 = vld [vmem:[%s116 + $0x28] sm:$0xff]
    %v123 = vld [vmem:[%s116 + $0x30] sm:$0xff]
    %v124 = vld [vmem:[%s116 + $0x38] sm:$0xff]
    %v125 = vld [vmem:[%s116 + $0x40] sm:$0xff]
    %v126 = vld [vmem:[%s116 + $0x48] sm:$0xff]
    %v127 = vld [vmem:[%s116 + $0x50] sm:$0xff]
    %v128 = vld [vmem:[%s116 + $0x58] sm:$0xff]
    %v129 = vld [vmem:[%s116 + $0x60] sm:$0xff]
    %v130 = vld [vmem:[%s116 + $0x68] sm:$0xff]
    %v131 = vld [vmem:[%s116 + $0x70] sm:$0xff]
    %v132 = vld [vmem:[%s116 + $0x78] sm:$0xff]
    %v133 = vld [vmem:[#allocation6] sm:$0xf]
    %v134 = vld [vmem:[#allocation6 + $0x4] sm:$0xf]
    %v135 = vld [vmem:[#allocation6 + $0x8] sm:$0xf]
    %v136 = vld [vmem:[#allocation6 + $0xc] sm:$0xf]
    %v137 = vld [vmem:[#allocation6 + $0x10] sm:$0xf]
    %v138 = vld [vmem:[#allocation6 + $0x14] sm:$0xf]
    %v139 = vld [vmem:[#allocation6 + $0x18] sm:$0xf]
    %v140 = vld [vmem:[#allocation6 + $0x1c] sm:$0xf]
    %v141 = vld [vmem:[#allocation6 + $0x20] sm:$0xf]
    %v142 = vld [vmem:[#allocation6 + $0x24] sm:$0xf]
    %v143 = vld [vmem:[#allocation6 + $0x28] sm:$0xf]
    %v144 = vld [vmem:[#allocation6 + $0x2c] sm:$0xf]
    %v145 = vld [vmem:[#allocation6 + $0x30] sm:$0xf]
    %v146 = vld [vmem:[#allocation6 + $0x34] sm:$0xf]
    %v147 = vld [vmem:[#allocation6 + $0x38] sm:$0xf]
    %v148 = vld [vmem:[#allocation6 + $0x3c] sm:$0xf]
    %v165 = vunpack.c.l.b16 %v99
    %v166 = vunpack.c.l.b16 %v100
    %v167 = vunpack.c.l.b16 %v101
    %v168 = vunpack.c.l.b16 %v102
    %v169 = vunpack.c.l.b16 %v103
    %v170 = vunpack.c.l.b16 %v104
    %v171 = vunpack.c.l.b16 %v105
    %v172 = vunpack.c.l.b16 %v106
    %v173 = vunpack.c.l.b16 %v107
    %v174 = vunpack.c.l.b16 %v108
    %v175 = vunpack.c.l.b16 %v109
    %v176 = vunpack.c.l.b16 %v110
    %v177 = vunpack.c.l.b16 %v111
    %v178 = vunpack.c.l.b16 %v112
    %v179 = vunpack.c.l.b16 %v113
    %v180 = vunpack.c.l.b16 %v114
    %v181 = vpack.c.b16 %v166, %v165
    %v182 = vpack.c.b16 %v168, %v167
    %v183 = vpack.c.b16 %v170, %v169
    %v184 = vpack.c.b16 %v172, %v171
    %v185 = vpack.c.b16 %v174, %v173
    %v186 = vpack.c.b16 %v176, %v175
    %v187 = vpack.c.b16 %v178, %v177
    %v188 = vpack.c.b16 %v180, %v179
    %v213 = vunpack.c.l.b16 %v133
    %v214 = vunpack.c.l.b16 %v134
    %v215 = vunpack.c.l.b16 %v135
    %v216 = vunpack.c.l.b16 %v136
    %v217 = vunpack.c.l.b16 %v137
    %v218 = vunpack.c.l.b16 %v138
    %v219 = vunpack.c.l.b16 %v139
    %v220 = vunpack.c.l.b16 %v140
    %v221 = vunpack.c.l.b16 %v141
    %v222 = vunpack.c.l.b16 %v142
    %v223 = vunpack.c.l.b16 %v143
    %v224 = vunpack.c.l.b16 %v144
    %v225 = vunpack.c.l.b16 %v145
    %v226 = vunpack.c.l.b16 %v146
    %v227 = vunpack.c.l.b16 %v147
    %v228 = vunpack.c.l.b16 %v148
    %v229 = vpack.c.b16 %v214, %v213
    %v230 = vpack.c.b16 %v216, %v215
    %v231 = vpack.c.b16 %v218, %v217
    %v232 = vpack.c.b16 %v220, %v219
    %v233 = vpack.c.b16 %v222, %v221
    %v234 = vpack.c.b16 %v224, %v223
    %v235 = vpack.c.b16 %v226, %v225
    %v236 = vpack.c.b16 %v228, %v227
    %245 = vmatprep.subr.bf16.mxu0 0
    %246 = vmatpush1.bf16.xpose.msra.mxu0 %v236
    %247 = vmatprep.subr.bf16.mxu0 0
    %248 = vmatpush1.bf16.xpose.msra.mxu0 %v235
    %249 = vmatprep.subr.bf16.mxu0 0
    %250 = vmatpush1.bf16.xpose.msra.mxu0 %v234
    %251 = vmatprep.subr.bf16.mxu0 0
    %252 = vmatpush1.bf16.xpose.msra.mxu0 %v233
    %253 = vmatprep.subr.bf16.mxu0 0
    %254 = vmatpush1.bf16.xpose.msra.mxu0 %v232
    %255 = vmatprep.subr.bf16.mxu0 0
    %256 = vmatpush1.bf16.xpose.msra.mxu0 %v231
    %257 = vmatprep.subr.bf16.mxu0 0
    %258 = vmatpush1.bf16.xpose.msra.mxu0 %v230
    %259 = vmatprep.subr.bf16.mxu0 0
    %260 = vmatpush1.bf16.xpose.msra.mxu0 %v229
    %261 = vmatprep.subr.bf16.mxu0 0
    %262 = vmatpush2.bf16.xpose.msra.mxu0 0
    %263 = vmatprep.subr.bf16.mxu0 0
    %264 = vmatpush2.bf16.xpose.msra.mxu0 0
    %265 = vmatprep.subr.bf16.mxu0 0
    %266 = vmatpush2.bf16.xpose.msra.mxu0 0
    %267 = vmatprep.subr.bf16.mxu0 0
    %268 = vmatpush2.bf16.xpose.msra.mxu0 0
    %269 = vmatprep.subr.bf16.mxu0 0
    %270 = vmatpush2.bf16.xpose.msra.mxu0 0
    %271 = vmatprep.subr.bf16.mxu0 0
    %272 = vmatpush2.bf16.xpose.msra.mxu0 0
    %273 = vmatprep.subr.bf16.mxu0 0
    %274 = vmatpush2.bf16.xpose.msra.mxu0 0
    %275 = vmatprep.subr.bf16.mxu0 0
    %276 = vmatpush2.bf16.xpose.msra.mxu0 0
    %277 = vmatprep.mubr.bf16.mxu0 0
    %278 = vmatmul.mubr.bf16.gmra.mxu0 %v181
    %v279 = vpop.f32.mrf.mxu0
    %v280 = vadd.f32 0.0, %v279
    %v281 = vpop.f32.mrf.mxu0
    %v282 = vpop.f32.mrf.mxu0
    %v283 = vadd.f32 0.0, %v282
    %v284 = vpop.f32.mrf.mxu0
    %285 = vmatprep.mubr.bf16.mxu0 0
    %286 = vmatmul.mubr.bf16.gmra.mxu0 %v182
    %v287 = vpop.f32.mrf.mxu0
    %v288 = vadd.f32 0.0, %v287
    %v289 = vpop.f32.mrf.mxu0
    %v290 = vpop.f32.mrf.mxu0
    %v291 = vadd.f32 0.0, %v290
    %v292 = vpop.f32.mrf.mxu0
    %293 = vmatprep.mubr.bf16.mxu0 0
    %294 = vmatmul.mubr.bf16.gmra.mxu0 %v183
    %v295 = vpop.f32.mrf.mxu0
    %v296 = vadd.f32 0.0, %v295
    %v297 = vpop.f32.mrf.mxu0
    %v298 = vpop.f32.mrf.mxu0
    %v299 = vadd.f32 0.0, %v298
    %v300 = vpop.f32.mrf.mxu0
    %301 = vmatprep.mubr.bf16.mxu0 0
    %302 = vmatmul.mubr.bf16.gmra.mxu0 %v184
    %v303 = vpop.f32.mrf.mxu0
    %v304 = vadd.f32 0.0, %v303
    %v305 = vpop.f32.mrf.mxu0
    %v306 = vpop.f32.mrf.mxu0
    %v307 = vadd.f32 0.0, %v306
    %v308 = vpop.f32.mrf.mxu0
    %309 = vmatprep.mubr.bf16.mxu0 0
    %310 = vmatmul.mubr.bf16.gmra.mxu0 %v185
    %v311 = vpop.f32.mrf.mxu0
    %v312 = vadd.f32 0.0, %v311
    %v313 = vpop.f32.mrf.mxu0
    %v314 = vpop.f32.mrf.mxu0
    %v315 = vadd.f32 0.0, %v314
    %v316 = vpop.f32.mrf.mxu0
    %317 = vmatprep.mubr.bf16.mxu0 0
    %318 = vmatmul.mubr.bf16.gmra.mxu0 %v186
    %v319 = vpop.f32.mrf.mxu0
    %v320 = vadd.f32 0.0, %v319
    %v321 = vpop.f32.mrf.mxu0
    %v322 = vpop.f32.mrf.mxu0
    %v323 = vadd.f32 0.0, %v322
    %v324 = vpop.f32.mrf.mxu0
    %325 = vmatprep.mubr.bf16.mxu0 0
    %326 = vmatmul.mubr.bf16.gmra.mxu0 %v187
    %v327 = vpop.f32.mrf.mxu0
    %v328 = vadd.f32 0.0, %v327
    %v329 = vpop.f32.mrf.mxu0
    %v330 = vpop.f32.mrf.mxu0
    %v331 = vadd.f32 0.0, %v330
    %v332 = vpop.f32.mrf.mxu0
    %333 = vmatprep.mubr.bf16.mxu0 0
    %334 = vmatmul.mubr.bf16.gmra.mxu0 %v188
    %v335 = vpop.f32.mrf.mxu0
    %v336 = vadd.f32 0.0, %v335
    %v337 = vpop.f32.mrf.mxu0
    %v338 = vpop.f32.mrf.mxu0
    %v339 = vadd.f32 0.0, %v338
    %v340 = vpop.f32.mrf.mxu0
    %341 = vdwg.mxu0
    %v342 = vadd.f32 %v117, %v280
    %v343 = vadd.f32 %v118, %v283
    %v344 = vadd.f32 %v119, %v288
    %v345 = vadd.f32 %v120, %v291
    %v346 = vadd.f32 %v121, %v296
    %v347 = vadd.f32 %v122, %v299
    %v348 = vadd.f32 %v123, %v304
    %v349 = vadd.f32 %v124, %v307
    %v350 = vadd.f32 %v125, %v312
    %v351 = vadd.f32 %v126, %v315
    %v352 = vadd.f32 %v127, %v320
    %v353 = vadd.f32 %v128, %v323
    %v354 = vadd.f32 %v129, %v328
    %v355 = vadd.f32 %v130, %v331
    %v356 = vadd.f32 %v131, %v336
    %v357 = vadd.f32 %v132, %v339
    %358 = vst [vmem:[%s116] sm:$0xff] %v342
    %359 = vst [vmem:[%s116 + $0x8] sm:$0xff] %v343
    %360 = vst [vmem:[%s116 + $0x10] sm:$0xff] %v344
    %361 = vst [vmem:[%s116 + $0x18] sm:$0xff] %v345
    %362 = vst [vmem:[%s116 + $0x20] sm:$0xff] %v346
    %363 = vst [vmem:[%s116 + $0x28] sm:$0xff] %v347
    %364 = vst [vmem:[%s116 + $0x30] sm:$0xff] %v348
    %365 = vst [vmem:[%s116 + $0x38] sm:$0xff] %v349
    %366 = vst [vmem:[%s116 + $0x40] sm:$0xff] %v350
    %367 = vst [vmem:[%s116 + $0x48] sm:$0xff] %v351
    %368 = vst [vmem:[%s116 + $0x50] sm:$0xff] %v352
    %369 = vst [vmem:[%s116 + $0x58] sm:$0xff] %v353
    %370 = vst [vmem:[%s116 + $0x60] sm:$0xff] %v354
    %371 = vst [vmem:[%s116 + $0x68] sm:$0xff] %v355
    %372 = vst [vmem:[%s116 + $0x70] sm:$0xff] %v356
    %373 = vst [vmem:[%s116 + $0x78] sm:$0xff] %v357
    // Predicated region
    $region34: #{tpu_custom_call.1} parent=1 // pred_check
      %p374 = pneg %p48
    $region35: #{tpu_custom_call.1} parent=1 // pred_check_branch
      %376 = sbr.rel (%p374) target = $region37
    $region36: #{tpu_custom_call.1} parent=1 // pred_region
      %v377 = vld [vmem:[#allocation3] sm:$0xff]
      %v378 = vld [vmem:[#allocation3 + $0x8] sm:$0xff]
      %v379 = vld [vmem:[#allocation3 + $0x10] sm:$0xff]
      %v380 = vld [vmem:[#allocation3 + $0x18] sm:$0xff]
      %v381 = vld [vmem:[#allocation3 + $0x20] sm:$0xff]
      %v382 = vld [vmem:[#allocation3 + $0x28] sm:$0xff]
      %v383 = vld [vmem:[#allocation3 + $0x30] sm:$0xff]
      %v384 = vld [vmem:[#allocation3 + $0x38] sm:$0xff]
      %v385 = vld [vmem:[#allocation3 + $0x40] sm:$0xff]
      %v386 = vld [vmem:[#allocation3 + $0x48] sm:$0xff]
      %v387 = vld [vmem:[#allocation3 + $0x50] sm:$0xff]
      %v388 = vld [vmem:[#allocation3 + $0x58] sm:$0xff]
      %v389 = vld [vmem:[#allocation3 + $0x60] sm:$0xff]
      %v390 = vld [vmem:[#allocation3 + $0x68] sm:$0xff]
      %v391 = vld [vmem:[#allocation3 + $0x70] sm:$0xff]
      %v392 = vld [vmem:[#allocation3 + $0x78] sm:$0xff]
      %v393 = vld [vmem:[%s3] sm:$0x1]
      %v394 = vunpack.c.l.bf16 %v99
      %v395 = vunpack.c.l.bf16 %v100
      %v396 = vunpack.c.l.bf16 %v101
      %v397 = vunpack.c.l.bf16 %v102
      %v398 = vunpack.c.l.bf16 %v103
      %v399 = vunpack.c.l.bf16 %v104
      %v400 = vunpack.c.l.bf16 %v105
      %v401 = vunpack.c.l.bf16 %v106
      %v402 = vunpack.c.l.bf16 %v107
      %v403 = vunpack.c.l.bf16 %v108
      %v404 = vunpack.c.l.bf16 %v109
      %v405 = vunpack.c.l.bf16 %v110
      %v406 = vunpack.c.l.bf16 %v111
      %v407 = vunpack.c.l.bf16 %v112
      %v408 = vunpack.c.l.bf16 %v113
      %v409 = vunpack.c.l.bf16 %v114
      %v411 = vlaneseq
      %v412 = vshrl.u32 %v411, 7
      %v413 = vsub.s32 0, %v412
      %v414 = vrot.slane %v393, %v413
      %v416 = vmul.f32 %v394, %v414
      %v417 = vmul.f32 %v395, %v414
      %v418 = vmul.f32 %v396, %v414
      %v419 = vmul.f32 %v397, %v414
      %v420 = vmul.f32 %v398, %v414
      %v421 = vmul.f32 %v399, %v414
      %v422 = vmul.f32 %v400, %v414
      %v423 = vmul.f32 %v401, %v414
      %v424 = vmul.f32 %v402, %v414
      %v425 = vmul.f32 %v403, %v414
      %v426 = vmul.f32 %v404, %v414
      %v427 = vmul.f32 %v405, %v414
      %v428 = vmul.f32 %v406, %v414
      %v429 = vmul.f32 %v407, %v414
      %v430 = vmul.f32 %v408, %v414
      %v431 = vmul.f32 %v409, %v414
      %432 = vadd.xlane.f32.xlu0 %v416
      %v433 = vpop.xlane.xlu0 %432
      %434 = vadd.xlane.f32.xlu0 %v417
      %v435 = vpop.xlane.xlu0 %434
      %436 = vadd.xlane.f32.xlu0 %v418
      %v437 = vpop.xlane.xlu0 %436
      %438 = vadd.xlane.f32.xlu0 %v419
      %v439 = vpop.xlane.xlu0 %438
      %440 = vadd.xlane.f32.xlu0 %v420
      %v441 = vpop.xlane.xlu0 %440
      %442 = vadd.xlane.f32.xlu0 %v421
      %v443 = vpop.xlane.xlu0 %442
      %444 = vadd.xlane.f32.xlu0 %v422
      %v445 = vpop.xlane.xlu0 %444
      %446 = vadd.xlane.f32.xlu0 %v423
      %v447 = vpop.xlane.xlu0 %446
      %448 = vadd.xlane.f32.xlu0 %v424
      %v449 = vpop.xlane.xlu0 %448
      %450 = vadd.xlane.f32.xlu0 %v425
      %v451 = vpop.xlane.xlu0 %450
      %452 = vadd.xlane.f32.xlu0 %v426
      %v453 = vpop.xlane.xlu0 %452
      %454 = vadd.xlane.f32.xlu0 %v427
      %v455 = vpop.xlane.xlu0 %454
      %456 = vadd.xlane.f32.xlu0 %v428
      %v457 = vpop.xlane.xlu0 %456
      %458 = vadd.xlane.f32.xlu0 %v429
      %v459 = vpop.xlane.xlu0 %458
      %460 = vadd.xlane.f32.xlu0 %v430
      %v461 = vpop.xlane.xlu0 %460
      %462 = vadd.xlane.f32.xlu0 %v431
      %v463 = vpop.xlane.xlu0 %462
      %v464 = vadd.f32 %v377, %v433
      %v465 = vadd.f32 %v378, %v435
      %v466 = vadd.f32 %v379, %v437
      %v467 = vadd.f32 %v380, %v439
      %v468 = vadd.f32 %v381, %v441
      %v469 = vadd.f32 %v382, %v443
      %v470 = vadd.f32 %v383, %v445
      %v471 = vadd.f32 %v384, %v447
      %v472 = vadd.f32 %v385, %v449
      %v473 = vadd.f32 %v386, %v451
      %v474 = vadd.f32 %v387, %v453
      %v475 = vadd.f32 %v388, %v455
      %v476 = vadd.f32 %v389, %v457
      %v477 = vadd.f32 %v390, %v459
      %v478 = vadd.f32 %v391, %v461
      %v479 = vadd.f32 %v392, %v463
      %vm480 = vcmask 7168
      %481 = vst.msk [vmem:[#allocation3] sm:$0xff] %vm480, %v464
      %482 = vst.msk [vmem:[#allocation3 + $0x8] sm:$0xff] %vm480, %v465
      %483 = vst.msk [vmem:[#allocation3 + $0x10] sm:$0xff] %vm480, %v466
      %484 = vst.msk [vmem:[#allocation3 + $0x18] sm:$0xff] %vm480, %v467
      %485 = vst.msk [vmem:[#allocation3 + $0x20] sm:$0xff] %vm480, %v468
      %486 = vst.msk [vmem:[#allocation3 + $0x28] sm:$0xff] %vm480, %v469
      %487 = vst.msk [vmem:[#allocation3 + $0x30] sm:$0xff] %vm480, %v470
      %488 = vst.msk [vmem:[#allocation3 + $0x38] sm:$0xff] %vm480, %v471
      %489 = vst.msk [vmem:[#allocation3 + $0x40] sm:$0xff] %vm480, %v472
      %490 = vst.msk [vmem:[#allocation3 + $0x48] sm:$0xff] %vm480, %v473
      %491 = vst.msk [vmem:[#allocation3 + $0x50] sm:$0xff] %vm480, %v474
      %492 = vst.msk [vmem:[#allocation3 + $0x58] sm:$0xff] %vm480, %v475
      %493 = vst.msk [vmem:[#allocation3 + $0x60] sm:$0xff] %vm480, %v476
      %494 = vst.msk [vmem:[#allocation3 + $0x68] sm:$0xff] %vm480, %v477
      %495 = vst.msk [vmem:[#allocation3 + $0x70] sm:$0xff] %vm480, %v478
      %496 = vst.msk [vmem:[#allocation3 + $0x78] sm:$0xff] %vm480, %v479
    $region37: #{tpu_custom_call.1} parent=1 // pred_fallthru
      _
    // Predicated region
    $region38: #{tpu_custom_call.1} parent=1 // pred_check
      %p497 = pneg %p49
    $region39: #{tpu_custom_call.1} parent=1 // pred_check_branch
      %499 = sbr.rel (%p497) target = $region41
    $region40: #{tpu_custom_call.1} parent=1 // pred_region
      %v500 = vld [vmem:[#allocation3] sm:$0xff]
      %v501 = vld [vmem:[#allocation3 + $0x8] sm:$0xff]
      %v502 = vld [vmem:[#allocation3 + $0x10] sm:$0xff]
      %v503 = vld [vmem:[#allocation3 + $0x18] sm:$0xff]
      %v504 = vld [vmem:[#allocation3 + $0x20] sm:$0xff]
      %v505 = vld [vmem:[#allocation3 + $0x28] sm:$0xff]
      %v506 = vld [vmem:[#allocation3 + $0x30] sm:$0xff]
      %v507 = vld [vmem:[#allocation3 + $0x38] sm:$0xff]
      %v508 = vld [vmem:[#allocation3 + $0x40] sm:$0xff]
      %v509 = vld [vmem:[#allocation3 + $0x48] sm:$0xff]
      %v510 = vld [vmem:[#allocation3 + $0x50] sm:$0xff]
      %v511 = vld [vmem:[#allocation3 + $0x58] sm:$0xff]
      %v512 = vld [vmem:[#allocation3 + $0x60] sm:$0xff]
      %v513 = vld [vmem:[#allocation3 + $0x68] sm:$0xff]
      %v514 = vld [vmem:[#allocation3 + $0x70] sm:$0xff]
      %v515 = vld [vmem:[#allocation3 + $0x78] sm:$0xff]
      %v516 = vld [vmem:[%s116] sm:$0xff]
      %v517 = vld [vmem:[%s116 + $0x8] sm:$0xff]
      %v518 = vld [vmem:[%s116 + $0x10] sm:$0xff]
      %v519 = vld [vmem:[%s116 + $0x18] sm:$0xff]
      %v520 = vld [vmem:[%s116 + $0x20] sm:$0xff]
      %v521 = vld [vmem:[%s116 + $0x28] sm:$0xff]
      %v522 = vld [vmem:[%s116 + $0x30] sm:$0xff]
      %v523 = vld [vmem:[%s116 + $0x38] sm:$0xff]
      %v524 = vld [vmem:[%s116 + $0x40] sm:$0xff]
      %v525 = vld [vmem:[%s116 + $0x48] sm:$0xff]
      %v526 = vld [vmem:[%s116 + $0x50] sm:$0xff]
      %v527 = vld [vmem:[%s116 + $0x58] sm:$0xff]
      %v528 = vld [vmem:[%s116 + $0x60] sm:$0xff]
      %v529 = vld [vmem:[%s116 + $0x68] sm:$0xff]
      %v530 = vld [vmem:[%s116 + $0x70] sm:$0xff]
      %v531 = vld [vmem:[%s116 + $0x78] sm:$0xff]
      %v532 = vmax.f32 %v516, 0.0
      %v533 = vmax.f32 %v517, 0.0
      %v534 = vmax.f32 %v518, 0.0
      %v535 = vmax.f32 %v519, 0.0
      %v536 = vmax.f32 %v520, 0.0
      %v537 = vmax.f32 %v521, 0.0
      %v538 = vmax.f32 %v522, 0.0
      %v539 = vmax.f32 %v523, 0.0
      %v540 = vmax.f32 %v524, 0.0
      %v541 = vmax.f32 %v525, 0.0
      %v542 = vmax.f32 %v526, 0.0
      %v543 = vmax.f32 %v527, 0.0
      %v544 = vmax.f32 %v528, 0.0
      %v545 = vmax.f32 %v529, 0.0
      %v546 = vmax.f32 %v530, 0.0
      %v547 = vmax.f32 %v531, 0.0
      %vm548 = vcmp.ne.f32.partialorder %v516, %v516
      %vm549 = vcmp.ne.f32.partialorder %v517, %v517
      %vm550 = vcmp.ne.f32.partialorder %v518, %v518
      %vm551 = vcmp.ne.f32.partialorder %v519, %v519
      %vm552 = vcmp.ne.f32.partialorder %v520, %v520
      %vm553 = vcmp.ne.f32.partialorder %v521, %v521
      %vm554 = vcmp.ne.f32.partialorder %v522, %v522
      %vm555 = vcmp.ne.f32.partialorder %v523, %v523
      %vm556 = vcmp.ne.f32.partialorder %v524, %v524
      %vm557 = vcmp.ne.f32.partialorder %v525, %v525
      %vm558 = vcmp.ne.f32.partialorder %v526, %v526
      %vm559 = vcmp.ne.f32.partialorder %v527, %v527
      %vm560 = vcmp.ne.f32.partialorder %v528, %v528
      %vm561 = vcmp.ne.f32.partialorder %v529, %v529
      %vm562 = vcmp.ne.f32.partialorder %v530, %v530
      %vm563 = vcmp.ne.f32.partialorder %v531, %v531
      %v564 = vadd.f32 %v516, 0.0
      %v565 = vadd.f32 %v517, 0.0
      %v566 = vadd.f32 %v518, 0.0
      %v567 = vadd.f32 %v519, 0.0
      %v568 = vadd.f32 %v520, 0.0
      %v569 = vadd.f32 %v521, 0.0
      %v570 = vadd.f32 %v522, 0.0
      %v571 = vadd.f32 %v523, 0.0
      %v572 = vadd.f32 %v524, 0.0
      %v573 = vadd.f32 %v525, 0.0
      %v574 = vadd.f32 %v526, 0.0
      %v575 = vadd.f32 %v527, 0.0
      %v576 = vadd.f32 %v528, 0.0
      %v577 = vadd.f32 %v529, 0.0
      %v578 = vadd.f32 %v530, 0.0
      %v579 = vadd.f32 %v531, 0.0
      %v580 = vand.u32 2147483647, %v516
      %v581 = vand.u32 2147483647, %v517
      %v582 = vand.u32 2147483647, %v518
      %v583 = vand.u32 2147483647, %v519
      %v584 = vand.u32 2147483647, %v520
      %v585 = vand.u32 2147483647, %v521
      %v586 = vand.u32 2147483647, %v522
      %v587 = vand.u32 2147483647, %v523
      %v588 = vand.u32 2147483647, %v524
      %v589 = vand.u32 2147483647, %v525
      %v590 = vand.u32 2147483647, %v526
      %v591 = vand.u32 2147483647, %v527
      %v592 = vand.u32 2147483647, %v528
      %v593 = vand.u32 2147483647, %v529
      %v594 = vand.u32 2147483647, %v530
      %v595 = vand.u32 2147483647, %v531
      %v596 = vsub.f32 0.0, %v580
      %v597 = vsub.f32 0.0, %v581
      %v598 = vsub.f32 0.0, %v582
      %v599 = vsub.f32 0.0, %v583
      %v600 = vsub.f32 0.0, %v584
      %v601 = vsub.f32 0.0, %v585
      %v602 = vsub.f32 0.0, %v586
      %v603 = vsub.f32 0.0, %v587
      %v604 = vsub.f32 0.0, %v588
      %v605 = vsub.f32 0.0, %v589
      %v606 = vsub.f32 0.0, %v590
      %v607 = vsub.f32 0.0, %v591
      %v608 = vsub.f32 0.0, %v592
      %v609 = vsub.f32 0.0, %v593
      %v610 = vsub.f32 0.0, %v594
      %v611 = vsub.f32 0.0, %v595
      %v612 = vmul.f32 %v596, 1.442695
      %v613 = vpow.pop %v612
      %v614 = vmul.f32 %v597, 1.442695
      %v615 = vpow.pop %v614
      %v616 = vmul.f32 %v598, 1.442695
      %v617 = vpow.pop %v616
      %v618 = vmul.f32 %v599, 1.442695
      %v619 = vpow.pop %v618
      %v620 = vmul.f32 %v600, 1.442695
      %v621 = vpow.pop %v620
      %v622 = vmul.f32 %v601, 1.442695
      %v623 = vpow.pop %v622
      %v624 = vmul.f32 %v602, 1.442695
      %v625 = vpow.pop %v624
      %v626 = vmul.f32 %v603, 1.442695
      %v627 = vpow.pop %v626
      %v628 = vmul.f32 %v604, 1.442695
      %v629 = vpow.pop %v628
      %v630 = vmul.f32 %v605, 1.442695
      %v631 = vpow.pop %v630
      %v632 = vmul.f32 %v606, 1.442695
      %v633 = vpow.pop %v632
      %v634 = vmul.f32 %v607, 1.442695
      %v635 = vpow.pop %v634
      %v636 = vmul.f32 %v608, 1.442695
      %v637 = vpow.pop %v636
      %v638 = vmul.f32 %v609, 1.442695
      %v639 = vpow.pop %v638
      %v640 = vmul.f32 %v610, 1.442695
      %v641 = vpow.pop %v640
      %v642 = vmul.f32 %v611, 1.442695
      %v643 = vpow.pop %v642
      %v644 = vadd.f32 %v613, 1.0
      %v645 = vlog2.pop %v644
      %v646 = vmul.f32 %v645, 0.6931472
      %v647 = vmul.f32 -0.5, %v613
      %v648 = vadd.f32 %v647, 1.0
      %v649 = vmul.f32 %v648, %v613
      %v650 = vand.u32 2147483647, %v613
      %vm651 = vcmp.lt.f32.partialorder %v650, 0.0004427343
      %v652 = vsel %vm651, %v649, %v646
      %v653 = vadd.f32 %v615, 1.0
      %v654 = vlog2.pop %v653
      %v655 = vmul.f32 %v654, 0.6931472
      %v656 = vmul.f32 -0.5, %v615
      %v657 = vadd.f32 %v656, 1.0
      %v658 = vmul.f32 %v657, %v615
      %v659 = vand.u32 2147483647, %v615
      %vm660 = vcmp.lt.f32.partialorder %v659, 0.0004427343
      %v661 = vsel %vm660, %v658, %v655
      %v662 = vadd.f32 %v617, 1.0
      %v663 = vlog2.pop %v662
      %v664 = vmul.f32 %v663, 0.6931472
      %v665 = vmul.f32 -0.5, %v617
      %v666 = vadd.f32 %v665, 1.0
      %v667 = vmul.f32 %v666, %v617
      %v668 = vand.u32 2147483647, %v617
      %vm669 = vcmp.lt.f32.partialorder %v668, 0.0004427343
      %v670 = vsel %vm669, %v667, %v664
      %v671 = vadd.f32 %v619, 1.0
      %v672 = vlog2.pop %v671
      %v673 = vmul.f32 %v672, 0.6931472
      %v674 = vmul.f32 -0.5, %v619
      %v675 = vadd.f32 %v674, 1.0
      %v676 = vmul.f32 %v675, %v619
      %v677 = vand.u32 2147483647, %v619
      %vm678 = vcmp.lt.f32.partialorder %v677, 0.0004427343
      %v679 = vsel %vm678, %v676, %v673
      %v680 = vadd.f32 %v621, 1.0
      %v681 = vlog2.pop %v680
      %v682 = vmul.f32 %v681, 0.6931472
      %v683 = vmul.f32 -0.5, %v621
      %v684 = vadd.f32 %v683, 1.0
      %v685 = vmul.f32 %v684, %v621
      %v686 = vand.u32 2147483647, %v621
      %vm687 = vcmp.lt.f32.partialorder %v686, 0.0004427343
      %v688 = vsel %vm687, %v685, %v682
      %v689 = vadd.f32 %v623, 1.0
      %v690 = vlog2.pop %v689
      %v691 = vmul.f32 %v690, 0.6931472
      %v692 = vmul.f32 -0.5, %v623
      %v693 = vadd.f32 %v692, 1.0
      %v694 = vmul.f32 %v693, %v623
      %v695 = vand.u32 2147483647, %v623
      %vm696 = vcmp.lt.f32.partialorder %v695, 0.0004427343
      %v697 = vsel %vm696, %v694, %v691
      %v698 = vadd.f32 %v625, 1.0
      %v699 = vlog2.pop %v698
      %v700 = vmul.f32 %v699, 0.6931472
      %v701 = vmul.f32 -0.5, %v625
      %v702 = vadd.f32 %v701, 1.0
      %v703 = vmul.f32 %v702, %v625
      %v704 = vand.u32 2147483647, %v625
      %vm705 = vcmp.lt.f32.partialorder %v704, 0.0004427343
      %v706 = vsel %vm705, %v703, %v700
      %v707 = vadd.f32 %v627, 1.0
      %v708 = vlog2.pop %v707
      %v709 = vmul.f32 %v708, 0.6931472
      %v710 = vmul.f32 -0.5, %v627
      %v711 = vadd.f32 %v710, 1.0
      %v712 = vmul.f32 %v711, %v627
      %v713 = vand.u32 2147483647, %v627
      %vm714 = vcmp.lt.f32.partialorder %v713, 0.0004427343
      %v715 = vsel %vm714, %v712, %v709
      %v716 = vadd.f32 %v629, 1.0
      %v717 = vlog2.pop %v716
      %v718 = vmul.f32 %v717, 0.6931472
      %v719 = vmul.f32 -0.5, %v629
      %v720 = vadd.f32 %v719, 1.0
      %v721 = vmul.f32 %v720, %v629
      %v722 = vand.u32 2147483647, %v629
      %vm723 = vcmp.lt.f32.partialorder %v722, 0.0004427343
      %v724 = vsel %vm723, %v721, %v718
      %v725 = vadd.f32 %v631, 1.0
      %v726 = vlog2.pop %v725
      %v727 = vmul.f32 %v726, 0.6931472
      %v728 = vmul.f32 -0.5, %v631
      %v729 = vadd.f32 %v728, 1.0
      %v730 = vmul.f32 %v729, %v631
      %v731 = vand.u32 2147483647, %v631
      %vm732 = vcmp.lt.f32.partialorder %v731, 0.0004427343
      %v733 = vsel %vm732, %v730, %v727
      %v734 = vadd.f32 %v633, 1.0
      %v735 = vlog2.pop %v734
      %v736 = vmul.f32 %v735, 0.6931472
      %v737 = vmul.f32 -0.5, %v633
      %v738 = vadd.f32 %v737, 1.0
      %v739 = vmul.f32 %v738, %v633
      %v740 = vand.u32 2147483647, %v633
      %vm741 = vcmp.lt.f32.partialorder %v740, 0.0004427343
      %v742 = vsel %vm741, %v739, %v736
      %v743 = vadd.f32 %v635, 1.0
      %v744 = vlog2.pop %v743
      %v745 = vmul.f32 %v744, 0.6931472
      %v746 = vmul.f32 -0.5, %v635
      %v747 = vadd.f32 %v746, 1.0
      %v748 = vmul.f32 %v747, %v635
      %v749 = vand.u32 2147483647, %v635
      %vm750 = vcmp.lt.f32.partialorder %v749, 0.0004427343
      %v751 = vsel %vm750, %v748, %v745
      %v752 = vadd.f32 %v637, 1.0
      %v753 = vlog2.pop %v752
      %v754 = vmul.f32 %v753, 0.6931472
      %v755 = vmul.f32 -0.5, %v637
      %v756 = vadd.f32 %v755, 1.0
      %v757 = vmul.f32 %v756, %v637
      %v758 = vand.u32 2147483647, %v637
      %vm759 = vcmp.lt.f32.partialorder %v758, 0.0004427343
      %v760 = vsel %vm759, %v757, %v754
      %v761 = vadd.f32 %v639, 1.0
      %v762 = vlog2.pop %v761
      %v763 = vmul.f32 %v762, 0.6931472
      %v764 = vmul.f32 -0.5, %v639
      %v765 = vadd.f32 %v764, 1.0
      %v766 = vmul.f32 %v765, %v639
      %v767 = vand.u32 2147483647, %v639
      %vm768 = vcmp.lt.f32.partialorder %v767, 0.0004427343
      %v769 = vsel %vm768, %v766, %v763
      %v770 = vadd.f32 %v641, 1.0
      %v771 = vlog2.pop %v770
      %v772 = vmul.f32 %v771, 0.6931472
      %v773 = vmul.f32 -0.5, %v641
      %v774 = vadd.f32 %v773, 1.0
      %v775 = vmul.f32 %v774, %v641
      %v776 = vand.u32 2147483647, %v641
      %vm777 = vcmp.lt.f32.partialorder %v776, 0.0004427343
      %v778 = vsel %vm777, %v775, %v772
      %v779 = vadd.f32 %v643, 1.0
      %v780 = vlog2.pop %v779
      %v781 = vmul.f32 %v780, 0.6931472
      %v782 = vmul.f32 -0.5, %v643
      %v783 = vadd.f32 %v782, 1.0
      %v784 = vmul.f32 %v783, %v643
      %v785 = vand.u32 2147483647, %v643
      %vm786 = vcmp.lt.f32.partialorder %v785, 0.0004427343
      %v787 = vsel %vm786, %v784, %v781
      %v788 = vadd.f32 %v532, %v652
      %v789 = vadd.f32 %v533, %v661
      %v790 = vadd.f32 %v534, %v670
      %v791 = vadd.f32 %v535, %v679
      %v792 = vadd.f32 %v536, %v688
      %v793 = vadd.f32 %v537, %v697
      %v794 = vadd.f32 %v538, %v706
      %v795 = vadd.f32 %v539, %v715
      %v796 = vadd.f32 %v540, %v724
      %v797 = vadd.f32 %v541, %v733
      %v798 = vadd.f32 %v542, %v742
      %v799 = vadd.f32 %v543, %v751
      %v800 = vadd.f32 %v544, %v760
      %v801 = vadd.f32 %v545, %v769
      %v802 = vadd.f32 %v546, %v778
      %v803 = vadd.f32 %v547, %v787
      %v804 = vsel %vm548, %v564, %v788
      %v805 = vsel %vm549, %v565, %v789
      %v806 = vsel %vm550, %v566, %v790
      %v807 = vsel %vm551, %v567, %v791
      %v808 = vsel %vm552, %v568, %v792
      %v809 = vsel %vm553, %v569, %v793
      %v810 = vsel %vm554, %v570, %v794
      %v811 = vsel %vm555, %v571, %v795
      %v812 = vsel %vm556, %v572, %v796
      %v813 = vsel %vm557, %v573, %v797
      %v814 = vsel %vm558, %v574, %v798
      %v815 = vsel %vm559, %v575, %v799
      %v816 = vsel %vm560, %v576, %v800
      %v817 = vsel %vm561, %v577, %v801
      %v818 = vsel %vm562, %v578, %v802
      %v819 = vsel %vm563, %v579, %v803
      %820 = vadd.xlane.f32.xlu0 %v804
      %v821 = vpop.xlane.xlu0 %820
      %822 = vadd.xlane.f32.xlu0 %v805
      %v823 = vpop.xlane.xlu0 %822
      %824 = vadd.xlane.f32.xlu0 %v806
      %v825 = vpop.xlane.xlu0 %824
      %826 = vadd.xlane.f32.xlu0 %v807
      %v827 = vpop.xlane.xlu0 %826
      %828 = vadd.xlane.f32.xlu0 %v808
      %v829 = vpop.xlane.xlu0 %828
      %830 = vadd.xlane.f32.xlu0 %v809
      %v831 = vpop.xlane.xlu0 %830
      %832 = vadd.xlane.f32.xlu0 %v810
      %v833 = vpop.xlane.xlu0 %832
      %834 = vadd.xlane.f32.xlu0 %v811
      %v835 = vpop.xlane.xlu0 %834
      %836 = vadd.xlane.f32.xlu0 %v812
      %v837 = vpop.xlane.xlu0 %836
      %838 = vadd.xlane.f32.xlu0 %v813
      %v839 = vpop.xlane.xlu0 %838
      %840 = vadd.xlane.f32.xlu0 %v814
      %v841 = vpop.xlane.xlu0 %840
      %842 = vadd.xlane.f32.xlu0 %v815
      %v843 = vpop.xlane.xlu0 %842
      %844 = vadd.xlane.f32.xlu0 %v816
      %v845 = vpop.xlane.xlu0 %844
      %846 = vadd.xlane.f32.xlu0 %v817
      %v847 = vpop.xlane.xlu0 %846
      %848 = vadd.xlane.f32.xlu0 %v818
      %v849 = vpop.xlane.xlu0 %848
      %850 = vadd.xlane.f32.xlu0 %v819
      %v851 = vpop.xlane.xlu0 %850
      %v852 = vadd.f32 %v500, %v821
      %v853 = vadd.f32 %v501, %v823
      %v854 = vadd.f32 %v502, %v825
      %v855 = vadd.f32 %v503, %v827
      %v856 = vadd.f32 %v504, %v829
      %v857 = vadd.f32 %v505, %v831
      %v858 = vadd.f32 %v506, %v833
      %v859 = vadd.f32 %v507, %v835
      %v860 = vadd.f32 %v508, %v837
      %v861 = vadd.f32 %v509, %v839
      %v862 = vadd.f32 %v510, %v841
      %v863 = vadd.f32 %v511, %v843
      %v864 = vadd.f32 %v512, %v845
      %v865 = vadd.f32 %v513, %v847
      %v866 = vadd.f32 %v514, %v849
      %v867 = vadd.f32 %v515, %v851
      %vm868 = vcmask 7168
      %869 = vst.msk [vmem:[#allocation3] sm:$0xff] %vm868, %v852
      %870 = vst.msk [vmem:[#allocation3 + $0x8] sm:$0xff] %vm868, %v853
      %871 = vst.msk [vmem:[#allocation3 + $0x10] sm:$0xff] %vm868, %v854
      %872 = vst.msk [vmem:[#allocation3 + $0x18] sm:$0xff] %vm868, %v855
      %873 = vst.msk [vmem:[#allocation3 + $0x20] sm:$0xff] %vm868, %v856
      %874 = vst.msk [vmem:[#allocation3 + $0x28] sm:$0xff] %vm868, %v857
      %875 = vst.msk [vmem:[#allocation3 + $0x30] sm:$0xff] %vm868, %v858
      %876 = vst.msk [vmem:[#allocation3 + $0x38] sm:$0xff] %vm868, %v859
      %877 = vst.msk [vmem:[#allocation3 + $0x40] sm:$0xff] %vm868, %v860
      %878 = vst.msk [vmem:[#allocation3 + $0x48] sm:$0xff] %vm868, %v861
      %879 = vst.msk [vmem:[#allocation3 + $0x50] sm:$0xff] %vm868, %v862
      %880 = vst.msk [vmem:[#allocation3 + $0x58] sm:$0xff] %vm868, %v863
      %881 = vst.msk [vmem:[#allocation3 + $0x60] sm:$0xff] %vm868, %v864
      %882 = vst.msk [vmem:[#allocation3 + $0x68] sm:$0xff] %vm868, %v865
      %883 = vst.msk [vmem:[#allocation3 + $0x70] sm:$0xff] %vm868, %v866
      %884 = vst.msk [vmem:[#allocation3 + $0x78] sm:$0xff] %vm868, %v867
    $region41: #{tpu_custom_call.1} parent=1 // pred_fallthru
      _
    // Predicated region
    $region42: #{tpu_custom_call.1} parent=1 // pred_check
      _
    $region43: #{tpu_custom_call.1} parent=1 // pred_check_branch
      %886 = sbr.rel (%p50) target = $region45
    $region44: #{tpu_custom_call.1} parent=1 // pred_region
      %v887 = vld [vmem:[#allocation3] sm:$0xff]
      %v888 = vld [vmem:[#allocation3 + $0x8] sm:$0xff]
      %v889 = vld [vmem:[#allocation3 + $0x10] sm:$0xff]
      %v890 = vld [vmem:[#allocation3 + $0x18] sm:$0xff]
      %v891 = vld [vmem:[#allocation3 + $0x20] sm:$0xff]
      %v892 = vld [vmem:[#allocation3 + $0x28] sm:$0xff]
      %v893 = vld [vmem:[#allocation3 + $0x30] sm:$0xff]
      %v894 = vld [vmem:[#allocation3 + $0x38] sm:$0xff]
      %v895 = vld [vmem:[#allocation3 + $0x40] sm:$0xff]
      %v896 = vld [vmem:[#allocation3 + $0x48] sm:$0xff]
      %v897 = vld [vmem:[#allocation3 + $0x50] sm:$0xff]
      %v898 = vld [vmem:[#allocation3 + $0x58] sm:$0xff]
      %v899 = vld [vmem:[#allocation3 + $0x60] sm:$0xff]
      %v900 = vld [vmem:[#allocation3 + $0x68] sm:$0xff]
      %v901 = vld [vmem:[#allocation3 + $0x70] sm:$0xff]
      %v902 = vld [vmem:[#allocation3 + $0x78] sm:$0xff]
      %vm903 = vcmask 7168
      %904 = vst.msk [vmem:[%s4] sm:$0xff] %vm903, %v887
      %905 = vst.msk [vmem:[%s4 + $0x8] sm:$0xff] %vm903, %v888
      %906 = vst.msk [vmem:[%s4 + $0x10] sm:$0xff] %vm903, %v889
      %907 = vst.msk [vmem:[%s4 + $0x18] sm:$0xff] %vm903, %v890
      %908 = vst.msk [vmem:[%s4 + $0x20] sm:$0xff] %vm903, %v891
      %909 = vst.msk [vmem:[%s4 + $0x28] sm:$0xff] %vm903, %v892
      %910 = vst.msk [vmem:[%s4 + $0x30] sm:$0xff] %vm903, %v893
      %911 = vst.msk [vmem:[%s4 + $0x38] sm:$0xff] %vm903, %v894
      %912 = vst.msk [vmem:[%s4 + $0x40] sm:$0xff] %vm903, %v895
      %913 = vst.msk [vmem:[%s4 + $0x48] sm:$0xff] %vm903, %v896
      %914 = vst.msk [vmem:[%s4 + $0x50] sm:$0xff] %vm903, %v897
      %915 = vst.msk [vmem:[%s4 + $0x58] sm:$0xff] %vm903, %v898
      %916 = vst.msk [vmem:[%s4 + $0x60] sm:$0xff] %vm903, %v899
      %917 = vst.msk [vmem:[%s4 + $0x68] sm:$0xff] %vm903, %v900
      %918 = vst.msk [vmem:[%s4 + $0x70] sm:$0xff] %vm903, %v901
      %919 = vst.msk [vmem:[%s4 + $0x78] sm:$0xff] %vm903, %v902
    $region45: #{tpu_custom_call.1} parent=1 // pred_fallthru
      _
    // Predicated region
    $region46: #{tpu_custom_call.1} parent=1 // pred_check
      _
    $region47: #{tpu_custom_call.1} parent=1 // pred_check_branch
      %921 = sbr.rel (0) target = $region49
    $region48: #{tpu_custom_call.1} parent=1 // pred_region
      _
    $region49: #{tpu_custom_call.1} parent=1 // pred_fallthru
      _
    // Predicated region
    $region50: #{tpu_custom_call.1} parent=1 // pred_check
      _
    $region51: #{tpu_custom_call.1} parent=1 // pred_check_branch
      %923 = sbr.rel (0) target = $region53
    $region52: #{tpu_custom_call.1} parent=1 // pred_region
      _
    $region53: #{tpu_custom_call.1} parent=1 // pred_fallthru
      _
    %924 = vsyncpa [#allocation5], 1
    %925 = vsyncpa [#allocation7], 1

</llo_original>
